<compile_context>
chip_gen: v7x
topology: tpu7x:2x2x1
jax: 0.10.0
libtpu: 0.0.40
codegen_flags: <defaults>
</compile_context>

<pallas_src>
import functools

import jax
import jax.numpy as jnp
from jax.experimental import pallas as pl
from jax.experimental.pallas import tpu as pltpu


def _round_up(x, m):
    return (x + m - 1) // m * m


# ----------------------------------------------------------------------------
# Pallas kernel: one batch element per grid step.
# ----------------------------------------------------------------------------
def _make_convlstm_kernel(Co, activation):
    if activation == "tanh":
        act = jnp.tanh
    elif activation == "relu":
        act = lambda v: jnp.maximum(v, 0.0)
    else:
        raise ValueError(f"unsupported activation: {activation}")

    def kernel(patches_ref, w_ref, b_ref, cprev_ref, wci_ref, wcf_ref, wco_ref,
               h_out_ref, c_out_ref):
        # --- convolution as one im2col matmul on the MXU --------------------
        # (4*Co, Kd) @ (Kd, H*W) -> (4*Co, H*W); bf16 operands, f32 accumulate.
        acc = jnp.dot(w_ref[...], patches_ref[0],
                      preferred_element_type=jnp.float32)
        acc = acc + b_ref[...]                       # (4*Co, 1) lane-broadcast

        # --- gate pre-activations: 8-aligned sublane slices ------------------
        i_conv = acc[0 * Co:1 * Co]                  # (Co, H*W)
        f_conv = acc[1 * Co:2 * Co]
        c_conv = acc[2 * Co:3 * Co]
        o_conv = acc[3 * Co:4 * Co]

        c_prev = cprev_ref[0]                        # (Co, H*W) f32
        w_ci = wci_ref[...]
        w_cf = wcf_ref[...]
        w_co = wco_ref[...]

        # --- peephole LSTM gate math (f32 on the VPU/EUP) --------------------
        input_gate = jax.nn.sigmoid(i_conv + w_ci * c_prev)
        forget_gate = jax.nn.sigmoid(f_conv + w_cf * c_prev)
        c_new = forget_gate * c_prev + input_gate * act(c_conv)
        output_gate = jax.nn.sigmoid(o_conv + w_co * c_new)
        h_new = output_gate * act(c_new)

        h_out_ref[0] = h_new                         # lane-dense (Co, H*W)
        c_out_ref[0] = c_new

    return kernel


# ----------------------------------------------------------------------------
# Wrapper: NCHW-native, builds im2col patches, calls pallas_call.
# ----------------------------------------------------------------------------
@functools.partial(jax.jit, static_argnames=("padding", "activation"))
def convlstm_cell_forward(x, h_prev, c_prev, w_oihw, bias,
                          w_ci, w_cf, w_co, padding, activation):
    """One ConvLSTMCell forward step.

    x:      (B, Cin, H, W)          NCHW (PyTorch layout)
    h_prev: (B, Co,  H, W)
    c_prev: (B, Co,  H, W)
    w_oihw: (4*Co, Cin+Co, K, K)    nn.Conv2d weight layout
    bias:   (4*Co,)
    w_ci / w_cf / w_co: (Co, H, W)  peephole parameters
    """
    B, Cin, H, W = x.shape
    Co = h_prev.shape[1]
    K = w_oihw.shape[-1]
    Cc = Cin + Co
    P = padding
    HW = H * W
    KKCc = K * K * Cc
    Kd = _round_up(KKCc, 128)        # pad contraction dim for clean MXU tiles

    # im2col patches in the kernel's layout (channel/tap on sublanes, pixels on
    # lanes).  No transposes: the data is already NCHW.
    xh = jnp.concatenate([x, h_prev], axis=1)                    # (B, Cc, H, W)
    xh_pad = jnp.pad(xh, ((0, 0), (0, 0), (P, P), (P, P)))
    taps = [xh_pad[:, :, kh:kh + H, kw:kw + W]
            for kh in range(K) for kw in range(K)]               # K*K slices
    patches = jnp.stack(taps, axis=2)                            # (B,Cc,K*K,H,W)
    patches = patches.reshape(B, KKCc, HW).astype(jnp.bfloat16)
    patches = jnp.pad(patches, ((0, 0), (0, Kd - KKCc), (0, 0)))

    # conv weight (4Co, Cc, K, K) -> (4Co, Cc*K*K); ordering matches patches.
    w_mat = w_oihw.reshape(4 * Co, KKCc).astype(jnp.bfloat16)
    w_mat = jnp.pad(w_mat, ((0, 0), (0, Kd - KKCc)))

    bias_col = bias.reshape(4 * Co, 1).astype(jnp.float32)
    c_prev_f = c_prev.reshape(B, Co, HW).astype(jnp.float32)
    w_ci_f = w_ci.reshape(Co, HW).astype(jnp.float32)
    w_cf_f = w_cf.reshape(Co, HW).astype(jnp.float32)
    w_co_f = w_co.reshape(Co, HW).astype(jnp.float32)

    kernel = _make_convlstm_kernel(Co, activation)

    out_shape = (jax.ShapeDtypeStruct((B, Co, HW), jnp.float32),
                 jax.ShapeDtypeStruct((B, Co, HW), jnp.float32))

    h_new, c_new = pl.pallas_call(
        kernel,
        out_shape=out_shape,
        grid=(B,),
        in_specs=[
            pl.BlockSpec((1, Kd, HW), lambda b: (b, 0, 0)),       # im2col patches
            pl.BlockSpec((4 * Co, Kd), lambda b: (0, 0)),         # conv weight
            pl.BlockSpec((4 * Co, 1), lambda b: (0, 0)),          # bias
            pl.BlockSpec((1, Co, HW), lambda b: (b, 0, 0)),       # C_prev
            pl.BlockSpec((Co, HW), lambda b: (0, 0)),             # W_ci
            pl.BlockSpec((Co, HW), lambda b: (0, 0)),             # W_cf
            pl.BlockSpec((Co, HW), lambda b: (0, 0)),             # W_co
        ],
        out_specs=(
            pl.BlockSpec((1, Co, HW), lambda b: (b, 0, 0)),       # H
            pl.BlockSpec((1, Co, HW), lambda b: (b, 0, 0)),       # C
        ),
        compiler_params=pltpu.CompilerParams(
            dimension_semantics=("parallel",)),
    )(patches, w_mat, bias_col, c_prev_f, w_ci_f, w_cf_f, w_co_f)

    # (B, Co, H*W) -> (B, Co, H, W): already NCHW, just un-flatten.
    return h_new.reshape(B, Co, H, W), c_new.reshape(B, Co, H, W)


# ----------------------------------------------------------------------------
# Pure-JAX reference (same bf16-operand / f32-accumulate conv numerics).
# ----------------------------------------------------------------------------
def convlstm_ref(x, h_prev, c_prev, w_oihw, bias, w_ci, w_cf, w_co,
                 padding, activation):
    act = jnp.tanh if activation == "tanh" else (lambda v: jnp.maximum(v, 0.0))
    xh = jnp.concatenate([x, h_prev], axis=1)
    conv = jax.lax.conv_general_dilated(
        xh.astype(jnp.bfloat16), w_oihw.astype(jnp.bfloat16),
        window_strides=(1, 1),
        padding=[(padding, padding), (padding, padding)],
        dimension_numbers=("NCHW", "OIHW", "NCHW"),
        preferred_element_type=jnp.float32)
    conv = conv + bias.reshape(1, -1, 1, 1)
    Co = h_prev.shape[1]
    i_conv, f_conv, c_conv, o_conv = (conv[:, i * Co:(i + 1) * Co]
                                      for i in range(4))
    input_gate = jax.nn.sigmoid(i_conv + w_ci * c_prev)
    forget_gate = jax.nn.sigmoid(f_conv + w_cf * c_prev)
    c_new = forget_gate * c_prev + input_gate * act(c_conv)
    output_gate = jax.nn.sigmoid(o_conv + w_co * c_new)
    h_new = output_gate * act(c_new)
    return h_new, c_new


if __name__ == "__main__":
    # Module hyperparameters (small, consistent with the PyTorch __init__).
    B, Cin, Co = 2, 4, 32
    H, W = 16, 16
    K, P = 3, 1
    activation = "tanh"

    key = jax.random.PRNGKey(0)
    ks = jax.random.split(key, 8)

    # Deterministic synthetic parameters (nn.Conv2d OIHW / nn.Parameter shapes).
    w_oihw = jax.random.normal(ks[0], (4 * Co, Cin + Co, K, K), jnp.float32) * 0.1
    bias = jax.random.normal(ks[1], (4 * Co,), jnp.float32) * 0.1
    w_ci = jax.random.normal(ks[2], (Co, H, W), jnp.float32) * 0.1
    w_cf = jax.random.normal(ks[3], (Co, H, W), jnp.float32) * 0.1
    w_co = jax.random.normal(ks[4], (Co, H, W), jnp.float32) * 0.1

    # Inputs in PyTorch NCHW convention.
    x = jax.random.normal(ks[5], (B, Cin, H, W), jnp.float32)
    h_prev = jax.random.normal(ks[6], (B, Co, H, W), jnp.float32)
    c_prev = jax.random.normal(ks[7], (B, Co, H, W), jnp.float32)

    h_new, c_new = convlstm_cell_forward(
        x, h_prev, c_prev, w_oihw, bias, w_ci, w_cf, w_co,
        padding=P, activation=activation)
    jax.block_until_ready((h_new, c_new))

    h_ref, c_ref = convlstm_ref(
        x, h_prev, c_prev, w_oihw, bias, w_ci, w_cf, w_co,
        padding=P, activation=activation)

    assert h_new.shape == (B, Co, H, W) and c_new.shape == (B, Co, H, W)
    assert jnp.allclose(h_new, h_ref, atol=2e-3, rtol=2e-3), \
        float(jnp.max(jnp.abs(h_new - h_ref)))
    assert jnp.allclose(c_new, c_ref, atol=2e-3, rtol=2e-3), \
        float(jnp.max(jnp.abs(c_new - c_ref)))

    print("KERNEL_OK")
</pallas_src>

<mosaic_0001>
module attributes {stable_mosaic.version = 11 : i64} {
  func.func @kernel(%arg0: i32, %arg1: memref<1x384x256xbf16, #tpu.memory_space<vmem>>, %arg2: memref<128x384xbf16, #tpu.memory_space<vmem>>, %arg3: memref<128x1xf32, #tpu.memory_space<vmem>>, %arg4: memref<1x32x256xf32, #tpu.memory_space<vmem>>, %arg5: memref<32x256xf32, #tpu.memory_space<vmem>>, %arg6: memref<32x256xf32, #tpu.memory_space<vmem>>, %arg7: memref<32x256xf32, #tpu.memory_space<vmem>>, %arg8: memref<1x32x256xf32, #tpu.memory_space<vmem>>, %arg9: memref<1x32x256xf32, #tpu.memory_space<vmem>>) attributes {dimension_semantics = [#tpu.dimension_semantics<parallel>], iteration_bounds = array<i64: 2>, scalar_prefetch = 0 : i64, scratch_operands = 0 : i64, tpu.core_type = #tpu.core_type<tc>, window_params = [{transform_indices = @transform_0, window_bounds = array<i64: 1, 384, 256>}, {pipeline_mode = #tpu.pipeline_mode<synchronous>, transform_indices = @transform_1, window_bounds = array<i64: 128, 384>}, {pipeline_mode = #tpu.pipeline_mode<synchronous>, transform_indices = @transform_2, window_bounds = array<i64: 128, 1>}, {transform_indices = @transform_3, window_bounds = array<i64: 1, 32, 256>}, {pipeline_mode = #tpu.pipeline_mode<synchronous>, transform_indices = @transform_4, window_bounds = array<i64: 32, 256>}, {pipeline_mode = #tpu.pipeline_mode<synchronous>, transform_indices = @transform_5, window_bounds = array<i64: 32, 256>}, {pipeline_mode = #tpu.pipeline_mode<synchronous>, transform_indices = @transform_6, window_bounds = array<i64: 32, 256>}, {transform_indices = @transform_7, window_bounds = array<i64: 1, 32, 256>}, {transform_indices = @transform_8, window_bounds = array<i64: 1, 32, 256>}]} {
    %c0 = arith.constant 0 : index
    %c0_0 = arith.constant 0 : index
    %0 = vector.load %arg2[%c0, %c0_0] : memref<128x384xbf16, #tpu.memory_space<vmem>>, vector<128x384xbf16>
    %c0_1 = arith.constant 0 : index
    %c0_2 = arith.constant 0 : index
    %c0_3 = arith.constant 0 : index
    %1 = vector.load %arg1[%c0_1, %c0_2, %c0_3] : memref<1x384x256xbf16, #tpu.memory_space<vmem>>, vector<1x384x256xbf16>
    %2 = vector.shape_cast %1 : vector<1x384x256xbf16> to vector<384x256xbf16>
    %cst = arith.constant dense<0.000000e+00> : vector<128x256xf32>
    %3 = tpu.matmul %0, %2, %cst {dimension_numbers = #tpu.dot_dimension_numbers<[1], [0], [0], [1], [0, 0, 1, 1], [], []>} : vector<128x384xbf16>, vector<384x256xbf16>, vector<128x256xf32> -> vector<128x256xf32>
    %c0_4 = arith.constant 0 : index
    %c0_5 = arith.constant 0 : index
    %4 = vector.load %arg3[%c0_4, %c0_5] : memref<128x1xf32, #tpu.memory_space<vmem>>, vector<128x1xf32>
    %5 = vector.broadcast %4 : vector<128x1xf32> to vector<128x256xf32>
    %6 = arith.addf %3, %5 : vector<128x256xf32>
    %7 = vector.extract_strided_slice %6 {offsets = [0, 0], sizes = [32, 256], strides = [1, 1]} : vector<128x256xf32> to vector<32x256xf32>
    %8 = vector.extract_strided_slice %6 {offsets = [32, 0], sizes = [32, 256], strides = [1, 1]} : vector<128x256xf32> to vector<32x256xf32>
    %9 = vector.extract_strided_slice %6 {offsets = [64, 0], sizes = [32, 256], strides = [1, 1]} : vector<128x256xf32> to vector<32x256xf32>
    %10 = vector.extract_strided_slice %6 {offsets = [96, 0], sizes = [32, 256], strides = [1, 1]} : vector<128x256xf32> to vector<32x256xf32>
    %c0_6 = arith.constant 0 : index
    %c0_7 = arith.constant 0 : index
    %c0_8 = arith.constant 0 : index
    %11 = vector.load %arg4[%c0_6, %c0_7, %c0_8] : memref<1x32x256xf32, #tpu.memory_space<vmem>>, vector<1x32x256xf32>
    %12 = vector.shape_cast %11 : vector<1x32x256xf32> to vector<32x256xf32>
    %c0_9 = arith.constant 0 : index
    %c0_10 = arith.constant 0 : index
    %13 = vector.load %arg5[%c0_9, %c0_10] : memref<32x256xf32, #tpu.memory_space<vmem>>, vector<32x256xf32>
    %c0_11 = arith.constant 0 : index
    %c0_12 = arith.constant 0 : index
    %14 = vector.load %arg6[%c0_11, %c0_12] : memref<32x256xf32, #tpu.memory_space<vmem>>, vector<32x256xf32>
    %c0_13 = arith.constant 0 : index
    %c0_14 = arith.constant 0 : index
    %15 = vector.load %arg7[%c0_13, %c0_14] : memref<32x256xf32, #tpu.memory_space<vmem>>, vector<32x256xf32>
    %16 = arith.mulf %13, %12 : vector<32x256xf32>
    %17 = arith.addf %7, %16 : vector<32x256xf32>
    %18 = arith.negf %17 : vector<32x256xf32>
    %19 = math.exp %18 : vector<32x256xf32>
    %cst_15 = arith.constant 1.000000e+00 : f32
    %20 = vector.broadcast %cst_15 : f32 to vector<32x256xf32>
    %21 = arith.addf %20, %19 : vector<32x256xf32>
    %22 = arith.divf %20, %21 : vector<32x256xf32>
    %23 = arith.mulf %14, %12 : vector<32x256xf32>
    %24 = arith.addf %8, %23 : vector<32x256xf32>
    %25 = arith.negf %24 : vector<32x256xf32>
    %26 = math.exp %25 : vector<32x256xf32>
    %cst_16 = arith.constant 1.000000e+00 : f32
    %27 = vector.broadcast %cst_16 : f32 to vector<32x256xf32>
    %28 = arith.addf %27, %26 : vector<32x256xf32>
    %29 = arith.divf %27, %28 : vector<32x256xf32>
    %30 = arith.mulf %29, %12 : vector<32x256xf32>
    %31 = math.tanh %9 : vector<32x256xf32>
    %32 = arith.mulf %22, %31 : vector<32x256xf32>
    %33 = arith.addf %30, %32 : vector<32x256xf32>
    %34 = arith.mulf %15, %33 : vector<32x256xf32>
    %35 = arith.addf %10, %34 : vector<32x256xf32>
    %36 = arith.negf %35 : vector<32x256xf32>
    %37 = math.exp %36 : vector<32x256xf32>
    %cst_17 = arith.constant 1.000000e+00 : f32
    %38 = vector.broadcast %cst_17 : f32 to vector<32x256xf32>
    %39 = arith.addf %38, %37 : vector<32x256xf32>
    %40 = arith.divf %38, %39 : vector<32x256xf32>
    %41 = math.tanh %33 : vector<32x256xf32>
    %42 = arith.mulf %40, %41 : vector<32x256xf32>
    %c0_18 = arith.constant 0 : index
    %c0_19 = arith.constant 0 : index
    %c0_20 = arith.constant 0 : index
    %43 = vector.load %arg8[%c0_18, %c0_19, %c0_20] : memref<1x32x256xf32, #tpu.memory_space<vmem>>, vector<1x32x256xf32>
    %44 = vector.shape_cast %43 : vector<1x32x256xf32> to vector<32x256xf32>
    %45 = vector.shape_cast %42 : vector<32x256xf32> to vector<1x32x256xf32>
    tpu.vector_store %arg8[%c0_18, %c0_19, %c0_20], %45 {strides = array<i32>} : memref<1x32x256xf32, #tpu.memory_space<vmem>>, vector<1x32x256xf32>,
    %c0_21 = arith.constant 0 : index
    %c0_22 = arith.constant 0 : index
    %c0_23 = arith.constant 0 : index
    %46 = vector.load %arg9[%c0_21, %c0_22, %c0_23] : memref<1x32x256xf32, #tpu.memory_space<vmem>>, vector<1x32x256xf32>
    %47 = vector.shape_cast %46 : vector<1x32x256xf32> to vector<32x256xf32>
    %48 = vector.shape_cast %33 : vector<32x256xf32> to vector<1x32x256xf32>
    tpu.vector_store %arg9[%c0_21, %c0_22, %c0_23], %48 {strides = array<i32>} : memref<1x32x256xf32, #tpu.memory_space<vmem>>, vector<1x32x256xf32>,
    return
  }
  func.func @transform_0(%arg0: i32) -> (i32, i32, i32) {
    %c0_i32 = arith.constant 0 : i32
    %c0_i32_0 = arith.constant 0 : i32
    %c0_i32_1 = arith.constant 0 : i32
    return %arg0, %c0_i32, %c0_i32_0 : i32, i32, i32
  }
  func.func @transform_1(%arg0: i32) -> (i32, i32) {
    %c0_i32 = arith.constant 0 : i32
    %c0_i32_0 = arith.constant 0 : i32
    %c0_i32_1 = arith.constant 0 : i32
    return %c0_i32, %c0_i32_0 : i32, i32
  }
  func.func @transform_2(%arg0: i32) -> (i32, i32) {
    %c0_i32 = arith.constant 0 : i32
    %c0_i32_0 = arith.constant 0 : i32
    %c0_i32_1 = arith.constant 0 : i32
    return %c0_i32, %c0_i32_0 : i32, i32
  }
  func.func @transform_3(%arg0: i32) -> (i32, i32, i32) {
    %c0_i32 = arith.constant 0 : i32
    %c0_i32_0 = arith.constant 0 : i32
    %c0_i32_1 = arith.constant 0 : i32
    return %arg0, %c0_i32, %c0_i32_0 : i32, i32, i32
  }
  func.func @transform_4(%arg0: i32) -> (i32, i32) {
    %c0_i32 = arith.constant 0 : i32
    %c0_i32_0 = arith.constant 0 : i32
    %c0_i32_1 = arith.constant 0 : i32
    return %c0_i32, %c0_i32_0 : i32, i32
  }
  func.func @transform_5(%arg0: i32) -> (i32, i32) {
    %c0_i32 = arith.constant 0 : i32
    %c0_i32_0 = arith.constant 0 : i32
    %c0_i32_1 = arith.constant 0 : i32
    return %c0_i32, %c0_i32_0 : i32, i32
  }
  func.func @transform_6(%arg0: i32) -> (i32, i32) {
    %c0_i32 = arith.constant 0 : i32
    %c0_i32_0 = arith.constant 0 : i32
    %c0_i32_1 = arith.constant 0 : i32
    return %c0_i32, %c0_i32_0 : i32, i32
  }
  func.func @transform_7(%arg0: i32) -> (i32, i32, i32) {
    %c0_i32 = arith.constant 0 : i32
    %c0_i32_0 = arith.constant 0 : i32
    %c0_i32_1 = arith.constant 0 : i32
    return %arg0, %c0_i32, %c0_i32_0 : i32, i32, i32
  }
  func.func @transform_8(%arg0: i32) -> (i32, i32, i32) {
    %c0_i32 = arith.constant 0 : i32
    %c0_i32_0 = arith.constant 0 : i32
    %c0_i32_1 = arith.constant 0 : i32
    return %arg0, %c0_i32, %c0_i32_0 : i32, i32, i32
  }
}

</mosaic_0001>

<llo_original>
// kernel: convlstm_cell_forward.1
$region0: #{convlstm_cell_forward.1}
  #allocation0 [shape = 'u32[]', space=smem, size = 0x4, offset = 0x4, fixed_abs, tag = 'smem constant byte address 0x4 - core index']
  #allocation1 [shape = 'u32[144,128]{1,0:T(1,128)}', space=vmem, size = 0x12000, scoped, tag = 'internal scratch']
  %s0 = inlined_call_operand.vmem [shape: bf16[2,384,256], index: 0, kind: input, shape index: {}]
  %s1 = inlined_call_operand.vmem [shape: bf16[128,384], index: 1, kind: input, shape index: {}]
  %s2 = inlined_call_operand.vmem [shape: f32[128,1], index: 2, kind: input, shape index: {}]
  %s3 = inlined_call_operand.vmem [shape: f32[2,32,256], index: 3, kind: input, shape index: {}]
  %s4 = inlined_call_operand.vmem [shape: f32[32,256], index: 4, kind: input, shape index: {}]
  %s5 = inlined_call_operand.vmem [shape: f32[32,256], index: 5, kind: input, shape index: {}]
  %s6 = inlined_call_operand.vmem [shape: f32[32,256], index: 6, kind: input, shape index: {}]
  %s7 = inlined_call_operand.vmem [shape: f32[2,32,256], index: 7, kind: output, shape index: {0}]
  %s8 = inlined_call_operand.vmem [shape: f32[2,32,256], index: 8, kind: output, shape index: {1}]
  %9 = xla_tuple %s7, %s8
  %s10 = sld [smem:[#allocation0]]
  $region69: #{convlstm_cell_forward.1} parent=0
    _
  %s12 = ssub.s32 1, %s10
  %s13 = scalar_select 0, %s12, %s10
  loop: start=0, step=1, limit=4
  $region2: #{convlstm_cell_forward.1} parent=0 // loop_pre_header
    _
  $region3: #{convlstm_cell_forward.1} parent=0 // loop_header
    %s15 = sphi 0, %s19
    %p16 = scmp.ge.s32.totalorder %s15, 4
    %s25 = sphi 0, %s27
    %s28 = sphi 0, %s25
    %s29 = sphi 0, %s28
    %s45 = sphi 0, %s29
    %s49 = sphi 0, %s49
    %s51 = sphi 0, %s49
    %s52 = sphi 0, %s51
    %s66 = sphi 0, %s52
    %s70 = sphi 0, %s70
    %s72 = sphi 0, %s70
    %s73 = sphi 0, %s72
    %s87 = sphi 0, %s73
    %s93 = sphi 0, %s95
    %s96 = sphi 0, %s93
    %s97 = sphi 0, %s96
    %s113 = sphi 0, %s97
    %s117 = sphi 0, %s117
    %s119 = sphi 0, %s117
    %s120 = sphi 0, %s119
    %s134 = sphi 0, %s120
    %s138 = sphi 0, %s138
    %s140 = sphi 0, %s138
    %s141 = sphi 0, %s140
    %s155 = sphi 0, %s141
    %s159 = sphi 0, %s159
    %s161 = sphi 0, %s159
    %s162 = sphi 0, %s161
    %s176 = sphi 0, %s162
    %s182 = sphi 0, %s184
    %s185 = sphi 0, %s182
    %s186 = sphi 0, %s185
    %s202 = sphi 0, %s186
    %s208 = sphi 0, %s210
    %s211 = sphi 0, %s208
    %s212 = sphi 0, %s211
    %s228 = sphi 0, %s212
  $region4: #{convlstm_cell_forward.1} parent=0 // loop_header_branch
    %18 = sbr.rel (%p16) target = $region8
  $region5: #{convlstm_cell_forward.1} parent=0 // loop_body
    %s20 = ssub.s32 %s15, 1
    %s21 = ssub.s32 %s15, 2
    %s22 = sadd.s32 %s15, 1
    %s23 = ssub.s32 %s15, %s22
    %p24 = scmp.eq.s32.totalorder %s23, 0
    %s26 = sadd.s32 %s25, 1
    %s27 = scalar_select %p24, %s25, %s26
    %p30 = pneg %p24
    %p31 = scmp.eq.s32.totalorder %s15, 1
    %p32 = por %p30, %p31
    %p33 = scmp.ne.s32.totalorder %s25, %s28
    %p34 = scmp.eq.s32.totalorder %s15, 0
    %p35 = por %p33, %p34
    %p36 = scmp.ne.s32.totalorder %s25, %s28
    %p37 = scmp.eq.s32.totalorder %s20, 1
    %p38 = por %p36, %p37
    %p39 = scmp.ne.s32.totalorder %s28, %s29
    %p40 = scmp.eq.s32.totalorder %s20, 0
    %p41 = por %p39, %p40
    %p42 = scmp.ne.s32.totalorder %s28, %s29
    %p43 = scmp.eq.s32.totalorder %s21, 1
    %p44 = por %p42, %p43
    %p46 = scmp.ne.s32.totalorder %s29, %s45
    %p47 = scmp.eq.s32.totalorder %s21, 0
    %p48 = por %p46, %p47
    %s50 = sadd.s32 %s49, 1
    %p53 = scmp.eq.s32.totalorder %s15, 1
    %p54 = scmp.ne.s32.totalorder %s49, %s51
    %p55 = scmp.eq.s32.totalorder %s15, 0
    %p56 = por %p54, %p55
    %p57 = scmp.ne.s32.totalorder %s49, %s51
    %p58 = scmp.eq.s32.totalorder %s20, 1
    %p59 = por %p57, %p58
    %p60 = scmp.ne.s32.totalorder %s51, %s52
    %p61 = scmp.eq.s32.totalorder %s20, 0
    %p62 = por %p60, %p61
    %p63 = scmp.ne.s32.totalorder %s51, %s52
    %p64 = scmp.eq.s32.totalorder %s21, 1
    %p65 = por %p63, %p64
    %p67 = scmp.ne.s32.totalorder %s52, %s66
    %p68 = scmp.eq.s32.totalorder %s21, 0
    %p69 = por %p67, %p68
    %s71 = sadd.s32 %s70, 1
    %p74 = scmp.eq.s32.totalorder %s15, 1
    %p75 = scmp.ne.s32.totalorder %s70, %s72
    %p76 = scmp.eq.s32.totalorder %s15, 0
    %p77 = por %p75, %p76
    %p78 = scmp.ne.s32.totalorder %s70, %s72
    %p79 = scmp.eq.s32.totalorder %s20, 1
    %p80 = por %p78, %p79
    %p81 = scmp.ne.s32.totalorder %s72, %s73
    %p82 = scmp.eq.s32.totalorder %s20, 0
    %p83 = por %p81, %p82
    %p84 = scmp.ne.s32.totalorder %s72, %s73
    %p85 = scmp.eq.s32.totalorder %s21, 1
    %p86 = por %p84, %p85
    %p88 = scmp.ne.s32.totalorder %s73, %s87
    %p89 = scmp.eq.s32.totalorder %s21, 0
    %p90 = por %p88, %p89
    %s91 = ssub.s32 %s15, %s22
    %p92 = scmp.eq.s32.totalorder %s91, 0
    %s94 = sadd.s32 %s93, 1
    %s95 = scalar_select %p92, %s93, %s94
    %p98 = pneg %p92
    %p99 = scmp.eq.s32.totalorder %s15, 1
    %p100 = por %p98, %p99
    %p101 = scmp.ne.s32.totalorder %s93, %s96
    %p102 = scmp.eq.s32.totalorder %s15, 0
    %p103 = por %p101, %p102
    %p104 = scmp.ne.s32.totalorder %s93, %s96
    %p105 = scmp.eq.s32.totalorder %s20, 1
    %p106 = por %p104, %p105
    %p107 = scmp.ne.s32.totalorder %s96, %s97
    %p108 = scmp.eq.s32.totalorder %s20, 0
    %p109 = por %p107, %p108
    %p110 = scmp.ne.s32.totalorder %s96, %s97
    %p111 = scmp.eq.s32.totalorder %s21, 1
    %p112 = por %p110, %p111
    %p114 = scmp.ne.s32.totalorder %s97, %s113
    %p115 = scmp.eq.s32.totalorder %s21, 0
    %p116 = por %p114, %p115
    %s118 = sadd.s32 %s117, 1
    %p121 = scmp.eq.s32.totalorder %s15, 1
    %p122 = scmp.ne.s32.totalorder %s117, %s119
    %p123 = scmp.eq.s32.totalorder %s15, 0
    %p124 = por %p122, %p123
    %p125 = scmp.ne.s32.totalorder %s117, %s119
    %p126 = scmp.eq.s32.totalorder %s20, 1
    %p127 = por %p125, %p126
    %p128 = scmp.ne.s32.totalorder %s119, %s120
    %p129 = scmp.eq.s32.totalorder %s20, 0
    %p130 = por %p128, %p129
    %p131 = scmp.ne.s32.totalorder %s119, %s120
    %p132 = scmp.eq.s32.totalorder %s21, 1
    %p133 = por %p131, %p132
    %p135 = scmp.ne.s32.totalorder %s120, %s134
    %p136 = scmp.eq.s32.totalorder %s21, 0
    %p137 = por %p135, %p136
    %s139 = sadd.s32 %s138, 1
    %p142 = scmp.eq.s32.totalorder %s15, 1
    %p143 = scmp.ne.s32.totalorder %s138, %s140
    %p144 = scmp.eq.s32.totalorder %s15, 0
    %p145 = por %p143, %p144
    %p146 = scmp.ne.s32.totalorder %s138, %s140
    %p147 = scmp.eq.s32.totalorder %s20, 1
    %p148 = por %p146, %p147
    %p149 = scmp.ne.s32.totalorder %s140, %s141
    %p150 = scmp.eq.s32.totalorder %s20, 0
    %p151 = por %p149, %p150
    %p152 = scmp.ne.s32.totalorder %s140, %s141
    %p153 = scmp.eq.s32.totalorder %s21, 1
    %p154 = por %p152, %p153
    %p156 = scmp.ne.s32.totalorder %s141, %s155
    %p157 = scmp.eq.s32.totalorder %s21, 0
    %p158 = por %p156, %p157
    %s160 = sadd.s32 %s159, 1
    %p163 = scmp.eq.s32.totalorder %s15, 1
    %p164 = scmp.ne.s32.totalorder %s159, %s161
    %p165 = scmp.eq.s32.totalorder %s15, 0
    %p166 = por %p164, %p165
    %p167 = scmp.ne.s32.totalorder %s159, %s161
    %p168 = scmp.eq.s32.totalorder %s20, 1
    %p169 = por %p167, %p168
    %p170 = scmp.ne.s32.totalorder %s161, %s162
    %p171 = scmp.eq.s32.totalorder %s20, 0
    %p172 = por %p170, %p171
    %p173 = scmp.ne.s32.totalorder %s161, %s162
    %p174 = scmp.eq.s32.totalorder %s21, 1
    %p175 = por %p173, %p174
    %p177 = scmp.ne.s32.totalorder %s162, %s176
    %p178 = scmp.eq.s32.totalorder %s21, 0
    %p179 = por %p177, %p178
    %s180 = ssub.s32 %s15, %s22
    %p181 = scmp.eq.s32.totalorder %s180, 0
    %s183 = sadd.s32 %s182, 1
    %s184 = scalar_select %p181, %s182, %s183
    %p187 = pneg %p181
    %p188 = scmp.eq.s32.totalorder %s15, 1
    %p189 = por %p187, %p188
    %p190 = scmp.ne.s32.totalorder %s182, %s185
    %p191 = scmp.eq.s32.totalorder %s15, 0
    %p192 = por %p190, %p191
    %p193 = scmp.ne.s32.totalorder %s182, %s185
    %p194 = scmp.eq.s32.totalorder %s20, 1
    %p195 = por %p193, %p194
    %p196 = scmp.ne.s32.totalorder %s185, %s186
    %p197 = scmp.eq.s32.totalorder %s20, 0
    %p198 = por %p196, %p197
    %p199 = scmp.ne.s32.totalorder %s185, %s186
    %p200 = scmp.eq.s32.totalorder %s21, 1
    %p201 = por %p199, %p200
    %p203 = scmp.ne.s32.totalorder %s186, %s202
    %p204 = scmp.eq.s32.totalorder %s21, 0
    %p205 = por %p203, %p204
    %s206 = ssub.s32 %s15, %s22
    %p207 = scmp.eq.s32.totalorder %s206, 0
    %s209 = sadd.s32 %s208, 1
    %s210 = scalar_select %p207, %s208, %s209
    %p213 = pneg %p207
    %p214 = scmp.eq.s32.totalorder %s15, 1
    %p215 = por %p213, %p214
    %p216 = scmp.ne.s32.totalorder %s208, %s211
    %p217 = scmp.eq.s32.totalorder %s15, 0
    %p218 = por %p216, %p217
    %p219 = scmp.ne.s32.totalorder %s208, %s211
    %p220 = scmp.eq.s32.totalorder %s20, 1
    %p221 = por %p219, %p220
    %p222 = scmp.ne.s32.totalorder %s211, %s212
    %p223 = scmp.eq.s32.totalorder %s20, 0
    %p224 = por %p222, %p223
    %p225 = scmp.ne.s32.totalorder %s211, %s212
    %p226 = scmp.eq.s32.totalorder %s21, 1
    %p227 = por %p225, %p226
    %p229 = scmp.ne.s32.totalorder %s212, %s228
    %p230 = scmp.eq.s32.totalorder %s21, 0
    %p231 = por %p229, %p230
    %p232 = scmp.le.s32.totalorder 1, %s15
    %p233 = scmp.lt.s32.totalorder %s15, 3
    %p234 = pnand %p232, %p233
    %p235 = pneg %p234
    // Predicated region
    $region9: #{convlstm_cell_forward.1} parent=5 // pred_check
      _
    $region10: #{convlstm_cell_forward.1} parent=5 // pred_check_branch
      %237 = sbr.rel (%p234) target = $region12
    $region11: #{convlstm_cell_forward.1} parent=5 // pred_region
      %s238 = ssub.s32 %s15, 1
      // Predicated region
      $region13: #{convlstm_cell_forward.1} parent=11 // pred_check
        %p239 = pneg %p62
      $region14: #{convlstm_cell_forward.1} parent=11 // pred_check_branch
        %241 = sbr.rel (%p239) target = $region16
      $region15: #{convlstm_cell_forward.1} parent=11 // pred_region
        _
      $region16: #{convlstm_cell_forward.1} parent=11 // pred_fallthru
        _
      // Predicated region
      $region17: #{convlstm_cell_forward.1} parent=11 // pred_check
        %p242 = pneg %p83
      $region18: #{convlstm_cell_forward.1} parent=11 // pred_check_branch
        %244 = sbr.rel (%p242) target = $region20
      $region19: #{convlstm_cell_forward.1} parent=11 // pred_region
        _
      $region20: #{convlstm_cell_forward.1} parent=11 // pred_fallthru
        _
      // Predicated region
      $region21: #{convlstm_cell_forward.1} parent=11 // pred_check
        %p245 = pneg %p130
      $region22: #{convlstm_cell_forward.1} parent=11 // pred_check_branch
        %247 = sbr.rel (%p245) target = $region24
      $region23: #{convlstm_cell_forward.1} parent=11 // pred_region
        _
      $region24: #{convlstm_cell_forward.1} parent=11 // pred_fallthru
        _
      // Predicated region
      $region25: #{convlstm_cell_forward.1} parent=11 // pred_check
        %p248 = pneg %p151
      $region26: #{convlstm_cell_forward.1} parent=11 // pred_check_branch
        %250 = sbr.rel (%p248) target = $region28
      $region27: #{convlstm_cell_forward.1} parent=11 // pred_region
        _
      $region28: #{convlstm_cell_forward.1} parent=11 // pred_fallthru
        _
      // Predicated region
      $region29: #{convlstm_cell_forward.1} parent=11 // pred_check
        %p251 = pneg %p172
      $region30: #{convlstm_cell_forward.1} parent=11 // pred_check_branch
        %253 = sbr.rel (%p251) target = $region32
      $region31: #{convlstm_cell_forward.1} parent=11 // pred_region
        _
      $region32: #{convlstm_cell_forward.1} parent=11 // pred_fallthru
        _
    $region12: #{convlstm_cell_forward.1} parent=5 // pred_fallthru
      _
    %p254 = scmp.lt.s32.totalorder %s15, 2
    // Predicated region
    $region33: #{convlstm_cell_forward.1} parent=5 // pred_check
      %p255 = pneg %p254
    $region34: #{convlstm_cell_forward.1} parent=5 // pred_check_branch
      %257 = sbr.rel (%p255) target = $region36
    $region35: #{convlstm_cell_forward.1} parent=5 // pred_region
      // Predicated region
      $region37: #{convlstm_cell_forward.1} parent=35 // pred_check
        %p258 = pneg %p35
      $region38: #{convlstm_cell_forward.1} parent=35 // pred_check_branch
        %260 = sbr.rel (%p258) target = $region40
      $region39: #{convlstm_cell_forward.1} parent=35 // pred_region
        %p261 = scmp.lt.s32.totalorder %s15, 1
        %s262 = scalar_select %p261, %s15, 1
        %s263 = smul.addr %s262, 96
        %s264 = smul.addr %s263, 4
        %s265 = scalar_lea.vmem %s0, %s264
      $region40: #{convlstm_cell_forward.1} parent=35 // pred_fallthru
        _
      // Predicated region
      $region41: #{convlstm_cell_forward.1} parent=35 // pred_check
        %p266 = pneg %p103
      $region42: #{convlstm_cell_forward.1} parent=35 // pred_check_branch
        %268 = sbr.rel (%p266) target = $region44
      $region43: #{convlstm_cell_forward.1} parent=35 // pred_region
        %p269 = scmp.lt.s32.totalorder %s15, 1
        %s270 = scalar_select %p269, %s15, 1
        %s271 = smul.addr %s270, 8
        %s272 = smul.addr %s271, 8
        %s273 = scalar_lea.vmem %s3, %s272
      $region44: #{convlstm_cell_forward.1} parent=35 // pred_fallthru
        _
    $region36: #{convlstm_cell_forward.1} parent=5 // pred_fallthru
      _
    %p274 = scmp.le.s32.totalorder 1, %s15
    %p275 = scmp.lt.s32.totalorder %s15, 3
    %p276 = pnand %p274, %p275
    %p277 = pneg %p276
    // Predicated region
    $region45: #{convlstm_cell_forward.1} parent=5 // pred_check
      _
    $region46: #{convlstm_cell_forward.1} parent=5 // pred_check_branch
      %279 = sbr.rel (%p276) target = $region48
    $region47: #{convlstm_cell_forward.1} parent=5 // pred_region
      %s280 = ssub.s32 %s15, 1
      %p281 = scmp.lt.s32.totalorder %s20, 1
      %s282 = scalar_select %p281, %s20, 1
      %s283 = smul.addr %s282, 96
      %s284 = smul.addr %s283, 4
      %s285 = scalar_lea.vmem %s0, %s284
      %p286 = pneg %p41
      %p287 = pneg %p38
      %p288 = pneg %p62
      %p289 = pneg %p59
      %p290 = pneg %p83
      %p291 = pneg %p80
      %p292 = scmp.lt.s32.totalorder %s20, 1
      %s293 = scalar_select %p292, %s20, 1
      %s294 = smul.addr %s293, 8
      %s295 = smul.addr %s294, 8
      %s296 = scalar_lea.vmem %s3, %s295
      %p297 = pneg %p109
      %p298 = pneg %p106
      %p299 = pneg %p130
      %p300 = pneg %p127
      %p301 = pneg %p151
      %p302 = pneg %p148
      %p303 = pneg %p172
      %p304 = pneg %p169
      %p305 = pneg %p198
      %p306 = pneg %p195
      %p307 = scmp.lt.s32.totalorder %s20, 1
      %s308 = scalar_select %p307, %s20, 1
      %s309 = smul.addr %s308, 8
      %s310 = smul.addr %s309, 8
      %s311 = scalar_lea.vmem %s7, %s310
      %p312 = pneg %p224
      %p313 = pneg %p221
      %p314 = scmp.lt.s32.totalorder %s20, 1
      %s315 = scalar_select %p314, %s20, 1
      %s316 = smul.addr %s315, 8
      %s317 = smul.addr %s316, 8
      %s318 = scalar_lea.vmem %s8, %s317
      %p319 = scmp.lt.s32.totalorder %s20, 1
      %s320 = scalar_select %p319, %s20, 1
      %s321 = smul.addr %s320, 96
      %s322 = smul.addr %s321, 4
      %s323 = scalar_lea.vmem %s0, %s322
      %p324 = scmp.lt.s32.totalorder %s20, 1
      %s325 = scalar_select %p324, %s20, 1
      %s326 = smul.addr %s325, 8
      %s327 = smul.addr %s326, 8
      %s328 = scalar_lea.vmem %s3, %s327
      %p329 = scmp.lt.s32.totalorder %s20, 1
      %s330 = scalar_select %p329, %s20, 1
      %s331 = smul.addr %s330, 8
      %s332 = smul.addr %s331, 8
      %s333 = scalar_lea.vmem %s7, %s332
      %p334 = scmp.lt.s32.totalorder %s20, 1
      %s335 = scalar_select %p334, %s20, 1
      %s336 = smul.addr %s335, 8
      %s337 = smul.addr %s336, 8
      %s338 = scalar_lea.vmem %s8, %s337
      %v340 = vld [vmem:[%s1] sm:$0xff]
      %v341 = vld [vmem:[%s1 + $0x8] sm:$0xf]
      %v342 = vld [vmem:[%s1 + $0xc] sm:$0xff]
      %v343 = vld [vmem:[%s1 + $0x14] sm:$0xf]
      %v344 = vld [vmem:[%s1 + $0x18] sm:$0xff]
      %v345 = vld [vmem:[%s1 + $0x20] sm:$0xf]
      %v346 = vld [vmem:[%s1 + $0x24] sm:$0xff]
      %v347 = vld [vmem:[%s1 + $0x2c] sm:$0xf]
      %v348 = vld [vmem:[%s1 + $0x30] sm:$0xff]
      %v349 = vld [vmem:[%s1 + $0x38] sm:$0xf]
      %v350 = vld [vmem:[%s1 + $0x3c] sm:$0xff]
      %v351 = vld [vmem:[%s1 + $0x44] sm:$0xf]
      %v352 = vld [vmem:[%s1 + $0x48] sm:$0xff]
      %v353 = vld [vmem:[%s1 + $0x50] sm:$0xf]
      %v354 = vld [vmem:[%s1 + $0x54] sm:$0xff]
      %v355 = vld [vmem:[%s1 + $0x5c] sm:$0xf]
      %v356 = vld [vmem:[%s1 + $0x60] sm:$0xff]
      %v357 = vld [vmem:[%s1 + $0x68] sm:$0xf]
      %v358 = vld [vmem:[%s1 + $0x6c] sm:$0xff]
      %v359 = vld [vmem:[%s1 + $0x74] sm:$0xf]
      %v360 = vld [vmem:[%s1 + $0x78] sm:$0xff]
      %v361 = vld [vmem:[%s1 + $0x80] sm:$0xf]
      %v362 = vld [vmem:[%s1 + $0x84] sm:$0xff]
      %v363 = vld [vmem:[%s1 + $0x8c] sm:$0xf]
      %v364 = vld [vmem:[%s1 + $0x90] sm:$0xff]
      %v365 = vld [vmem:[%s1 + $0x98] sm:$0xf]
      %v366 = vld [vmem:[%s1 + $0x9c] sm:$0xff]
      %v367 = vld [vmem:[%s1 + $0xa4] sm:$0xf]
      %v368 = vld [vmem:[%s1 + $0xa8] sm:$0xff]
      %v369 = vld [vmem:[%s1 + $0xb0] sm:$0xf]
      %v370 = vld [vmem:[%s1 + $0xb4] sm:$0xff]
      %v371 = vld [vmem:[%s1 + $0xbc] sm:$0xf]
      %v372 = vld [vmem:[%s323] sm:$0xff]
      %v373 = vld [vmem:[%s323 + $0x8] sm:$0xff]
      %v374 = vld [vmem:[%s323 + $0x10] sm:$0xff]
      %v375 = vld [vmem:[%s323 + $0x18] sm:$0xff]
      %v376 = vld [vmem:[%s323 + $0x20] sm:$0xff]
      %v377 = vld [vmem:[%s323 + $0x28] sm:$0xff]
      %v378 = vld [vmem:[%s323 + $0x30] sm:$0xff]
      %v379 = vld [vmem:[%s323 + $0x38] sm:$0xff]
      %v380 = vld [vmem:[%s323 + $0x40] sm:$0xff]
      %v381 = vld [vmem:[%s323 + $0x48] sm:$0xff]
      %v382 = vld [vmem:[%s323 + $0x50] sm:$0xff]
      %v383 = vld [vmem:[%s323 + $0x58] sm:$0xff]
      %v384 = vld [vmem:[%s323 + $0x60] sm:$0xff]
      %v385 = vld [vmem:[%s323 + $0x68] sm:$0xff]
      %v386 = vld [vmem:[%s323 + $0x70] sm:$0xff]
      %v387 = vld [vmem:[%s323 + $0x78] sm:$0xff]
      %v388 = vld [vmem:[%s323 + $0x80] sm:$0xff]
      %v389 = vld [vmem:[%s323 + $0x88] sm:$0xff]
      %v390 = vld [vmem:[%s323 + $0x90] sm:$0xff]
      %v391 = vld [vmem:[%s323 + $0x98] sm:$0xff]
      %v392 = vld [vmem:[%s323 + $0xa0] sm:$0xff]
      %v393 = vld [vmem:[%s323 + $0xa8] sm:$0xff]
      %v394 = vld [vmem:[%s323 + $0xb0] sm:$0xff]
      %v395 = vld [vmem:[%s323 + $0xb8] sm:$0xff]
      %v396 = vld [vmem:[%s323 + $0xc0] sm:$0xff]
      %v397 = vld [vmem:[%s323 + $0xc8] sm:$0xff]
      %v398 = vld [vmem:[%s323 + $0xd0] sm:$0xff]
      %v399 = vld [vmem:[%s323 + $0xd8] sm:$0xff]
      %v400 = vld [vmem:[%s323 + $0xe0] sm:$0xff]
      %v401 = vld [vmem:[%s323 + $0xe8] sm:$0xff]
      %v402 = vld [vmem:[%s323 + $0xf0] sm:$0xff]
      %v403 = vld [vmem:[%s323 + $0xf8] sm:$0xff]
      %v404 = vld [vmem:[%s323 + $0x100] sm:$0xff]
      %v405 = vld [vmem:[%s323 + $0x108] sm:$0xff]
      %v406 = vld [vmem:[%s323 + $0x110] sm:$0xff]
      %v407 = vld [vmem:[%s323 + $0x118] sm:$0xff]
      %v408 = vld [vmem:[%s323 + $0x120] sm:$0xff]
      %v409 = vld [vmem:[%s323 + $0x128] sm:$0xff]
      %v410 = vld [vmem:[%s323 + $0x130] sm:$0xff]
      %v411 = vld [vmem:[%s323 + $0x138] sm:$0xff]
      %v412 = vld [vmem:[%s323 + $0x140] sm:$0xff]
      %v413 = vld [vmem:[%s323 + $0x148] sm:$0xff]
      %v414 = vld [vmem:[%s323 + $0x150] sm:$0xff]
      %v415 = vld [vmem:[%s323 + $0x158] sm:$0xff]
      %v416 = vld [vmem:[%s323 + $0x160] sm:$0xff]
      %v417 = vld [vmem:[%s323 + $0x168] sm:$0xff]
      %v418 = vld [vmem:[%s323 + $0x170] sm:$0xff]
      %v419 = vld [vmem:[%s323 + $0x178] sm:$0xff]
      %v420 = vld [vmem:[%s2] sm:$0xff]
      %v421 = vld [vmem:[%s2 + $0x8] sm:$0xff]
      %v422 = vld [vmem:[%s2 + $0x10] sm:$0xff]
      %v423 = vld [vmem:[%s2 + $0x18] sm:$0xff]
      %v424 = vld [vmem:[%s2 + $0x20] sm:$0xff]
      %v425 = vld [vmem:[%s2 + $0x28] sm:$0xff]
      %v426 = vld [vmem:[%s2 + $0x30] sm:$0xff]
      %v427 = vld [vmem:[%s2 + $0x38] sm:$0xff]
      %v428 = vld [vmem:[%s2 + $0x40] sm:$0xff]
      %v429 = vld [vmem:[%s2 + $0x48] sm:$0xff]
      %v430 = vld [vmem:[%s2 + $0x50] sm:$0xff]
      %v431 = vld [vmem:[%s2 + $0x58] sm:$0xff]
      %v432 = vld [vmem:[%s2 + $0x60] sm:$0xff]
      %v433 = vld [vmem:[%s2 + $0x68] sm:$0xff]
      %v434 = vld [vmem:[%s2 + $0x70] sm:$0xff]
      %v435 = vld [vmem:[%s2 + $0x78] sm:$0xff]
      %437 = vset.pattern.permute.xlu0 0
      %438 = vperm.xlu0 %437, %v420
      %v439 = vpop.permute.xlu0 %438
      %442 = vset.pattern.permute.xlu0 0
      %443 = vperm.xlu0 %442, %v421
      %v444 = vpop.permute.xlu0 %443
      %447 = vset.pattern.permute.xlu0 0
      %448 = vperm.xlu0 %447, %v422
      %v449 = vpop.permute.xlu0 %448
      %452 = vset.pattern.permute.xlu0 0
      %453 = vperm.xlu0 %452, %v423
      %v454 = vpop.permute.xlu0 %453
      %457 = vset.pattern.permute.xlu0 0
      %458 = vperm.xlu0 %457, %v424
      %v459 = vpop.permute.xlu0 %458
      %462 = vset.pattern.permute.xlu0 0
      %463 = vperm.xlu0 %462, %v425
      %v464 = vpop.permute.xlu0 %463
      %467 = vset.pattern.permute.xlu0 0
      %468 = vperm.xlu0 %467, %v426
      %v469 = vpop.permute.xlu0 %468
      %472 = vset.pattern.permute.xlu0 0
      %473 = vperm.xlu0 %472, %v427
      %v474 = vpop.permute.xlu0 %473
      %477 = vset.pattern.permute.xlu0 0
      %478 = vperm.xlu0 %477, %v428
      %v479 = vpop.permute.xlu0 %478
      %482 = vset.pattern.permute.xlu0 0
      %483 = vperm.xlu0 %482, %v429
      %v484 = vpop.permute.xlu0 %483
      %487 = vset.pattern.permute.xlu0 0
      %488 = vperm.xlu0 %487, %v430
      %v489 = vpop.permute.xlu0 %488
      %492 = vset.pattern.permute.xlu0 0
      %493 = vperm.xlu0 %492, %v431
      %v494 = vpop.permute.xlu0 %493
      %497 = vset.pattern.permute.xlu0 0
      %498 = vperm.xlu0 %497, %v432
      %v499 = vpop.permute.xlu0 %498
      %502 = vset.pattern.permute.xlu0 0
      %503 = vperm.xlu0 %502, %v433
      %v504 = vpop.permute.xlu0 %503
      %507 = vset.pattern.permute.xlu0 0
      %508 = vperm.xlu0 %507, %v434
      %v509 = vpop.permute.xlu0 %508
      %512 = vset.pattern.permute.xlu0 0
      %513 = vperm.xlu0 %512, %v435
      %v514 = vpop.permute.xlu0 %513
      %v548 = vunpack.c.l.b16 %v340
      %v549 = vunpack.c.h.b16 %v340
      %v550 = vunpack.c.l.b16 %v341
      %v551 = vunpack.c.l.b16 %v342
      %v552 = vunpack.c.h.b16 %v342
      %v553 = vunpack.c.l.b16 %v343
      %v554 = vunpack.c.l.b16 %v344
      %v555 = vunpack.c.h.b16 %v344
      %v556 = vunpack.c.l.b16 %v345
      %v557 = vunpack.c.l.b16 %v346
      %v558 = vunpack.c.h.b16 %v346
      %v559 = vunpack.c.l.b16 %v347
      %v560 = vunpack.c.l.b16 %v348
      %v561 = vunpack.c.h.b16 %v348
      %v562 = vunpack.c.l.b16 %v349
      %v563 = vunpack.c.l.b16 %v350
      %v564 = vunpack.c.h.b16 %v350
      %v565 = vunpack.c.l.b16 %v351
      %v566 = vunpack.c.l.b16 %v352
      %v567 = vunpack.c.h.b16 %v352
      %v568 = vunpack.c.l.b16 %v353
      %v569 = vunpack.c.l.b16 %v354
      %v570 = vunpack.c.h.b16 %v354
      %v571 = vunpack.c.l.b16 %v355
      %v572 = vunpack.c.l.b16 %v356
      %v573 = vunpack.c.h.b16 %v356
      %v574 = vunpack.c.l.b16 %v357
      %v575 = vunpack.c.l.b16 %v358
      %v576 = vunpack.c.h.b16 %v358
      %v577 = vunpack.c.l.b16 %v359
      %v578 = vunpack.c.l.b16 %v360
      %v579 = vunpack.c.h.b16 %v360
      %v580 = vunpack.c.l.b16 %v361
      %v581 = vunpack.c.l.b16 %v362
      %v582 = vunpack.c.h.b16 %v362
      %v583 = vunpack.c.l.b16 %v363
      %v584 = vunpack.c.l.b16 %v364
      %v585 = vunpack.c.h.b16 %v364
      %v586 = vunpack.c.l.b16 %v365
      %v587 = vunpack.c.l.b16 %v366
      %v588 = vunpack.c.h.b16 %v366
      %v589 = vunpack.c.l.b16 %v367
      %v590 = vunpack.c.l.b16 %v368
      %v591 = vunpack.c.h.b16 %v368
      %v592 = vunpack.c.l.b16 %v369
      %v593 = vunpack.c.l.b16 %v370
      %v594 = vunpack.c.h.b16 %v370
      %v595 = vunpack.c.l.b16 %v371
      %v596 = vpack.c.b16 %v551, %v548
      %v597 = vpack.c.b16 %v552, %v549
      %v598 = vpack.c.b16 %v553, %v550
      %v599 = vpack.c.b16 %v557, %v554
      %v600 = vpack.c.b16 %v558, %v555
      %v601 = vpack.c.b16 %v559, %v556
      %v602 = vpack.c.b16 %v563, %v560
      %v603 = vpack.c.b16 %v564, %v561
      %v604 = vpack.c.b16 %v565, %v562
      %v605 = vpack.c.b16 %v569, %v566
      %v606 = vpack.c.b16 %v570, %v567
      %v607 = vpack.c.b16 %v571, %v568
      %v608 = vpack.c.b16 %v575, %v572
      %v609 = vpack.c.b16 %v576, %v573
      %v610 = vpack.c.b16 %v577, %v574
      %v611 = vpack.c.b16 %v581, %v578
      %v612 = vpack.c.b16 %v582, %v579
      %v613 = vpack.c.b16 %v583, %v580
      %v614 = vpack.c.b16 %v587, %v584
      %v615 = vpack.c.b16 %v588, %v585
      %v616 = vpack.c.b16 %v589, %v586
      %v617 = vpack.c.b16 %v593, %v590
      %v618 = vpack.c.b16 %v594, %v591
      %v619 = vpack.c.b16 %v595, %v592
      %v692 = vunpack.c.l.b16 %v372
      %v693 = vunpack.c.h.b16 %v372
      %v694 = vunpack.c.l.b16 %v373
      %v695 = vunpack.c.h.b16 %v373
      %v696 = vunpack.c.l.b16 %v374
      %v697 = vunpack.c.h.b16 %v374
      %v698 = vunpack.c.l.b16 %v375
      %v699 = vunpack.c.h.b16 %v375
      %v700 = vunpack.c.l.b16 %v376
      %v701 = vunpack.c.h.b16 %v376
      %v702 = vunpack.c.l.b16 %v377
      %v703 = vunpack.c.h.b16 %v377
      %v704 = vunpack.c.l.b16 %v378
      %v705 = vunpack.c.h.b16 %v378
      %v706 = vunpack.c.l.b16 %v379
      %v707 = vunpack.c.h.b16 %v379
      %v708 = vunpack.c.l.b16 %v380
      %v709 = vunpack.c.h.b16 %v380
      %v710 = vunpack.c.l.b16 %v381
      %v711 = vunpack.c.h.b16 %v381
      %v712 = vunpack.c.l.b16 %v382
      %v713 = vunpack.c.h.b16 %v382
      %v714 = vunpack.c.l.b16 %v383
      %v715 = vunpack.c.h.b16 %v383
      %v716 = vunpack.c.l.b16 %v384
      %v717 = vunpack.c.h.b16 %v384
      %v718 = vunpack.c.l.b16 %v385
      %v719 = vunpack.c.h.b16 %v385
      %v720 = vunpack.c.l.b16 %v386
      %v721 = vunpack.c.h.b16 %v386
      %v722 = vunpack.c.l.b16 %v387
      %v723 = vunpack.c.h.b16 %v387
      %v724 = vunpack.c.l.b16 %v388
      %v725 = vunpack.c.h.b16 %v388
      %v726 = vunpack.c.l.b16 %v389
      %v727 = vunpack.c.h.b16 %v389
      %v728 = vunpack.c.l.b16 %v390
      %v729 = vunpack.c.h.b16 %v390
      %v730 = vunpack.c.l.b16 %v391
      %v731 = vunpack.c.h.b16 %v391
      %v732 = vunpack.c.l.b16 %v392
      %v733 = vunpack.c.h.b16 %v392
      %v734 = vunpack.c.l.b16 %v393
      %v735 = vunpack.c.h.b16 %v393
      %v736 = vunpack.c.l.b16 %v394
      %v737 = vunpack.c.h.b16 %v394
      %v738 = vunpack.c.l.b16 %v395
      %v739 = vunpack.c.h.b16 %v395
      %v740 = vunpack.c.l.b16 %v396
      %v741 = vunpack.c.h.b16 %v396
      %v742 = vunpack.c.l.b16 %v397
      %v743 = vunpack.c.h.b16 %v397
      %v744 = vunpack.c.l.b16 %v398
      %v745 = vunpack.c.h.b16 %v398
      %v746 = vunpack.c.l.b16 %v399
      %v747 = vunpack.c.h.b16 %v399
      %v748 = vunpack.c.l.b16 %v400
      %v749 = vunpack.c.h.b16 %v400
      %v750 = vunpack.c.l.b16 %v401
      %v751 = vunpack.c.h.b16 %v401
      %v752 = vunpack.c.l.b16 %v402
      %v753 = vunpack.c.h.b16 %v402
      %v754 = vunpack.c.l.b16 %v403
      %v755 = vunpack.c.h.b16 %v403
      %v756 = vunpack.c.l.b16 %v404
      %v757 = vunpack.c.h.b16 %v404
      %v758 = vunpack.c.l.b16 %v405
      %v759 = vunpack.c.h.b16 %v405
      %v760 = vunpack.c.l.b16 %v406
      %v761 = vunpack.c.h.b16 %v406
      %v762 = vunpack.c.l.b16 %v407
      %v763 = vunpack.c.h.b16 %v407
      %v764 = vunpack.c.l.b16 %v408
      %v765 = vunpack.c.h.b16 %v408
      %v766 = vunpack.c.l.b16 %v409
      %v767 = vunpack.c.h.b16 %v409
      %v768 = vunpack.c.l.b16 %v410
      %v769 = vunpack.c.h.b16 %v410
      %v770 = vunpack.c.l.b16 %v411
      %v771 = vunpack.c.h.b16 %v411
      %v772 = vunpack.c.l.b16 %v412
      %v773 = vunpack.c.h.b16 %v412
      %v774 = vunpack.c.l.b16 %v413
      %v775 = vunpack.c.h.b16 %v413
      %v776 = vunpack.c.l.b16 %v414
      %v777 = vunpack.c.h.b16 %v414
      %v778 = vunpack.c.l.b16 %v415
      %v779 = vunpack.c.h.b16 %v415
      %v780 = vunpack.c.l.b16 %v416
      %v781 = vunpack.c.h.b16 %v416
      %v782 = vunpack.c.l.b16 %v417
      %v783 = vunpack.c.h.b16 %v417
      %v784 = vunpack.c.l.b16 %v418
      %v785 = vunpack.c.h.b16 %v418
      %v786 = vunpack.c.l.b16 %v419
      %v787 = vunpack.c.h.b16 %v419
      %v788 = vpack.c.b16 %v694, %v692
      %v789 = vpack.c.b16 %v695, %v693
      %v790 = vpack.c.b16 %v698, %v696
      %v791 = vpack.c.b16 %v699, %v697
      %v792 = vpack.c.b16 %v702, %v700
      %v793 = vpack.c.b16 %v703, %v701
      %v794 = vpack.c.b16 %v706, %v704
      %v795 = vpack.c.b16 %v707, %v705
      %v796 = vpack.c.b16 %v710, %v708
      %v797 = vpack.c.b16 %v711, %v709
      %v798 = vpack.c.b16 %v714, %v712
      %v799 = vpack.c.b16 %v715, %v713
      %v800 = vpack.c.b16 %v718, %v716
      %v801 = vpack.c.b16 %v719, %v717
      %v802 = vpack.c.b16 %v722, %v720
      %v803 = vpack.c.b16 %v723, %v721
      %v804 = vpack.c.b16 %v726, %v724
      %v805 = vpack.c.b16 %v727, %v725
      %v806 = vpack.c.b16 %v730, %v728
      %v807 = vpack.c.b16 %v731, %v729
      %v808 = vpack.c.b16 %v734, %v732
      %v809 = vpack.c.b16 %v735, %v733
      %v810 = vpack.c.b16 %v738, %v736
      %v811 = vpack.c.b16 %v739, %v737
      %v812 = vpack.c.b16 %v742, %v740
      %v813 = vpack.c.b16 %v743, %v741
      %v814 = vpack.c.b16 %v746, %v744
      %v815 = vpack.c.b16 %v747, %v745
      %v816 = vpack.c.b16 %v750, %v748
      %v817 = vpack.c.b16 %v751, %v749
      %v818 = vpack.c.b16 %v754, %v752
      %v819 = vpack.c.b16 %v755, %v753
      %v820 = vpack.c.b16 %v758, %v756
      %v821 = vpack.c.b16 %v759, %v757
      %v822 = vpack.c.b16 %v762, %v760
      %v823 = vpack.c.b16 %v763, %v761
      %v824 = vpack.c.b16 %v766, %v764
      %v825 = vpack.c.b16 %v767, %v765
      %v826 = vpack.c.b16 %v770, %v768
      %v827 = vpack.c.b16 %v771, %v769
      %v828 = vpack.c.b16 %v774, %v772
      %v829 = vpack.c.b16 %v775, %v773
      %v830 = vpack.c.b16 %v778, %v776
      %v831 = vpack.c.b16 %v779, %v777
      %v832 = vpack.c.b16 %v782, %v780
      %v833 = vpack.c.b16 %v783, %v781
      %v834 = vpack.c.b16 %v786, %v784
      %v835 = vpack.c.b16 %v787, %v785
      %884 = vmatprep.subr.bf16.mxu0 %v789
      %885 = vmatpush1.bf16.msra.mxu0 %v788
      %886 = vmatprep.subr.bf16.mxu0 %v791
      %887 = vmatpush1.bf16.msra.mxu0 %v790
      %888 = vmatprep.subr.bf16.mxu0 %v793
      %889 = vmatpush1.bf16.msra.mxu0 %v792
      %890 = vmatprep.subr.bf16.mxu0 %v795
      %891 = vmatpush1.bf16.msra.mxu0 %v794
      %892 = vmatprep.subr.bf16.mxu0 %v797
      %893 = vmatpush1.bf16.msra.mxu0 %v796
      %894 = vmatprep.subr.bf16.mxu0 %v799
      %895 = vmatpush1.bf16.msra.mxu0 %v798
      %896 = vmatprep.subr.bf16.mxu0 %v801
      %897 = vmatpush1.bf16.msra.mxu0 %v800
      %898 = vmatprep.subr.bf16.mxu0 %v803
      %899 = vmatpush1.bf16.msra.mxu0 %v802
      %900 = vmatprep.subr.bf16.mxu0 %v805
      %901 = vmatpush1.bf16.msra.mxu0 %v804
      %902 = vmatprep.subr.bf16.mxu0 %v807
      %903 = vmatpush1.bf16.msra.mxu0 %v806
      %904 = vmatprep.subr.bf16.mxu0 %v809
      %905 = vmatpush1.bf16.msra.mxu0 %v808
      %906 = vmatprep.subr.bf16.mxu0 %v811
      %907 = vmatpush1.bf16.msra.mxu0 %v810
      %908 = vmatprep.subr.bf16.mxu0 %v813
      %909 = vmatpush1.bf16.msra.mxu0 %v812
      %910 = vmatprep.subr.bf16.mxu0 %v815
      %911 = vmatpush1.bf16.msra.mxu0 %v814
      %912 = vmatprep.subr.bf16.mxu0 %v817
      %913 = vmatpush1.bf16.msra.mxu0 %v816
      %914 = vmatprep.subr.bf16.mxu0 %v819
      %915 = vmatpush1.bf16.msra.mxu0 %v818
      %916 = vmatprep.mubr.bf16.mxu0 %v597
      %917 = vmatmul.mubr.bf16.gmra.mrb[0].mxu0 %v596
      %v918 = vpop.f32.mrb[0].mxu0
      %v919 = vadd.f32 %v439, %v918
      %v920 = vpop.f32.mrb[0].mxu0
      %v921 = vadd.f32 %v439, %v920
      %v922 = vpop.f32.mrb[0].mxu0
      %v923 = vadd.f32 %v444, %v922
      %v924 = vpop.f32.mrb[0].mxu0
      %v925 = vadd.f32 %v444, %v924
      %926 = vmatprep.mubr.bf16.mxu0 %v600
      %927 = vmatmul.mubr.bf16.gmra.mrb[0].mxu0 %v599
      %v928 = vpop.f32.mrb[0].mxu0
      %v929 = vadd.f32 %v449, %v928
      %v930 = vpop.f32.mrb[0].mxu0
      %v931 = vadd.f32 %v449, %v930
      %v932 = vpop.f32.mrb[0].mxu0
      %v933 = vadd.f32 %v454, %v932
      %v934 = vpop.f32.mrb[0].mxu0
      %v935 = vadd.f32 %v454, %v934
      %936 = vmatprep.mubr.bf16.mxu0 %v603
      %937 = vmatmul.mubr.bf16.gmra.mrb[0].mxu0 %v602
      %v938 = vpop.f32.mrb[0].mxu0
      %v939 = vadd.f32 %v459, %v938
      %v940 = vpop.f32.mrb[0].mxu0
      %v941 = vadd.f32 %v459, %v940
      %v942 = vpop.f32.mrb[0].mxu0
      %v943 = vadd.f32 %v464, %v942
      %v944 = vpop.f32.mrb[0].mxu0
      %v945 = vadd.f32 %v464, %v944
      %946 = vmatprep.mubr.bf16.mxu0 %v606
      %947 = vmatmul.mubr.bf16.gmra.mrb[0].mxu0 %v605
      %v948 = vpop.f32.mrb[0].mxu0
      %v949 = vadd.f32 %v469, %v948
      %v950 = vpop.f32.mrb[0].mxu0
      %v951 = vadd.f32 %v469, %v950
      %v952 = vpop.f32.mrb[0].mxu0
      %v953 = vadd.f32 %v474, %v952
      %v954 = vpop.f32.mrb[0].mxu0
      %v955 = vadd.f32 %v474, %v954
      %956 = vmatprep.mubr.bf16.mxu0 %v609
      %957 = vmatmul.mubr.bf16.gmra.mrb[0].mxu0 %v608
      %v958 = vpop.f32.mrb[0].mxu0
      %v959 = vadd.f32 %v479, %v958
      %v960 = vpop.f32.mrb[0].mxu0
      %v961 = vadd.f32 %v479, %v960
      %v962 = vpop.f32.mrb[0].mxu0
      %v963 = vadd.f32 %v484, %v962
      %v964 = vpop.f32.mrb[0].mxu0
      %v965 = vadd.f32 %v484, %v964
      %966 = vmatprep.mubr.bf16.mxu0 %v612
      %967 = vmatmul.mubr.bf16.gmra.mrb[0].mxu0 %v611
      %v968 = vpop.f32.mrb[0].mxu0
      %v969 = vadd.f32 %v489, %v968
      %v970 = vpop.f32.mrb[0].mxu0
      %v971 = vadd.f32 %v489, %v970
      %v972 = vpop.f32.mrb[0].mxu0
      %v973 = vadd.f32 %v494, %v972
      %v974 = vpop.f32.mrb[0].mxu0
      %v975 = vadd.f32 %v494, %v974
      %976 = vmatprep.mubr.bf16.mxu0 %v615
      %977 = vmatmul.mubr.bf16.gmra.mrb[0].mxu0 %v614
      %v978 = vpop.f32.mrb[0].mxu0
      %v979 = vadd.f32 %v499, %v978
      %v980 = vpop.f32.mrb[0].mxu0
      %v981 = vadd.f32 %v499, %v980
      %v982 = vpop.f32.mrb[0].mxu0
      %v983 = vadd.f32 %v504, %v982
      %v984 = vpop.f32.mrb[0].mxu0
      %v985 = vadd.f32 %v504, %v984
      %986 = vmatprep.mubr.bf16.mxu0 %v618
      %987 = vmatmul.mubr.bf16.gmra.mrb[0].mxu0 %v617
      %v988 = vpop.f32.mrb[0].mxu0
      %v989 = vadd.f32 %v509, %v988
      %v990 = vpop.f32.mrb[0].mxu0
      %v991 = vadd.f32 %v509, %v990
      %v992 = vpop.f32.mrb[0].mxu0
      %v993 = vadd.f32 %v514, %v992
      %v994 = vpop.f32.mrb[0].mxu0
      %v995 = vadd.f32 %v514, %v994
      %996 = vdwg.mxu0
      %997 = vmatprep.subr.bf16.mxu0 %v821
      %998 = vmatpush1.bf16.msra.mxu0 %v820
      %999 = vmatprep.subr.bf16.mxu0 %v823
      %1000 = vmatpush1.bf16.msra.mxu0 %v822
      %1001 = vmatprep.subr.bf16.mxu0 %v825
      %1002 = vmatpush1.bf16.msra.mxu0 %v824
      %1003 = vmatprep.subr.bf16.mxu0 %v827
      %1004 = vmatpush1.bf16.msra.mxu0 %v826
      %1005 = vmatprep.subr.bf16.mxu0 %v829
      %1006 = vmatpush1.bf16.msra.mxu0 %v828
      %1007 = vmatprep.subr.bf16.mxu0 %v831
      %1008 = vmatpush1.bf16.msra.mxu0 %v830
      %1009 = vmatprep.subr.bf16.mxu0 %v833
      %1010 = vmatpush1.bf16.msra.mxu0 %v832
      %1011 = vmatprep.subr.bf16.mxu0 %v835
      %1012 = vmatpush1.bf16.msra.mxu0 %v834
      %1013 = vmatprep.subr.bf16.mxu0 0
      %1014 = vmatpush1.bf16.msra.mxu0 0
      %1015 = vmatprep.subr.bf16.mxu0 0
      %1016 = vmatpush1.bf16.msra.mxu0 0
      %1017 = vmatprep.subr.bf16.mxu0 0
      %1018 = vmatpush1.bf16.msra.mxu0 0
      %1019 = vmatprep.subr.bf16.mxu0 0
      %1020 = vmatpush1.bf16.msra.mxu0 0
      %1021 = vmatprep.subr.bf16.mxu0 0
      %1022 = vmatpush1.bf16.msra.mxu0 0
      %1023 = vmatprep.subr.bf16.mxu0 0
      %1024 = vmatpush1.bf16.msra.mxu0 0
      %1025 = vmatprep.subr.bf16.mxu0 0
      %1026 = vmatpush1.bf16.msra.mxu0 0
      %1027 = vmatprep.subr.bf16.mxu0 0
      %1028 = vmatpush1.bf16.msra.mxu0 0
      %1029 = vmatprep.mubr.bf16.mxu0 0
      %1030 = vmatmul.mubr.bf16.gmra.mrb[0].mxu0 %v598
      %v1031 = vpop.f32.mrb[0].mxu0
      %v1032 = vadd.f32 %v919, %v1031
      %v1033 = vpop.f32.mrb[0].mxu0
      %v1034 = vadd.f32 %v921, %v1033
      %v1035 = vpop.f32.mrb[0].mxu0
      %v1036 = vadd.f32 %v923, %v1035
      %v1037 = vpop.f32.mrb[0].mxu0
      %v1038 = vadd.f32 %v925, %v1037
      %1039 = vmatprep.mubr.bf16.mxu0 0
      %1040 = vmatmul.mubr.bf16.gmra.mrb[0].mxu0 %v601
      %v1041 = vpop.f32.mrb[0].mxu0
      %v1042 = vadd.f32 %v929, %v1041
      %v1043 = vpop.f32.mrb[0].mxu0
      %v1044 = vadd.f32 %v931, %v1043
      %v1045 = vpop.f32.mrb[0].mxu0
      %v1046 = vadd.f32 %v933, %v1045
      %v1047 = vpop.f32.mrb[0].mxu0
      %v1048 = vadd.f32 %v935, %v1047
      %1049 = vmatprep.mubr.bf16.mxu0 0
      %1050 = vmatmul.mubr.bf16.gmra.mrb[0].mxu0 %v604
      %v1051 = vpop.f32.mrb[0].mxu0
      %v1052 = vadd.f32 %v939, %v1051
      %v1053 = vpop.f32.mrb[0].mxu0
      %v1054 = vadd.f32 %v941, %v1053
      %v1055 = vpop.f32.mrb[0].mxu0
      %v1056 = vadd.f32 %v943, %v1055
      %v1057 = vpop.f32.mrb[0].mxu0
      %v1058 = vadd.f32 %v945, %v1057
      %1059 = vmatprep.mubr.bf16.mxu0 0
      %1060 = vmatmul.mubr.bf16.gmra.mrb[0].mxu0 %v607
      %v1061 = vpop.f32.mrb[0].mxu0
      %v1062 = vadd.f32 %v949, %v1061
      %v1063 = vpop.f32.mrb[0].mxu0
      %v1064 = vadd.f32 %v951, %v1063
      %v1065 = vpop.f32.mrb[0].mxu0
      %v1066 = vadd.f32 %v953, %v1065
      %v1067 = vpop.f32.mrb[0].mxu0
      %v1068 = vadd.f32 %v955, %v1067
      %1069 = vmatprep.mubr.bf16.mxu0 0
      %1070 = vmatmul.mubr.bf16.gmra.mrb[0].mxu0 %v610
      %v1071 = vpop.f32.mrb[0].mxu0
      %v1072 = vadd.f32 %v959, %v1071
      %v1073 = vpop.f32.mrb[0].mxu0
      %v1074 = vadd.f32 %v961, %v1073
      %v1075 = vpop.f32.mrb[0].mxu0
      %v1076 = vadd.f32 %v963, %v1075
      %v1077 = vpop.f32.mrb[0].mxu0
      %v1078 = vadd.f32 %v965, %v1077
      %1079 = vmatprep.mubr.bf16.mxu0 0
      %1080 = vmatmul.mubr.bf16.gmra.mrb[0].mxu0 %v613
      %v1081 = vpop.f32.mrb[0].mxu0
      %v1082 = vadd.f32 %v969, %v1081
      %v1083 = vpop.f32.mrb[0].mxu0
      %v1084 = vadd.f32 %v971, %v1083
      %v1085 = vpop.f32.mrb[0].mxu0
      %v1086 = vadd.f32 %v973, %v1085
      %v1087 = vpop.f32.mrb[0].mxu0
      %v1088 = vadd.f32 %v975, %v1087
      %1089 = vmatprep.mubr.bf16.mxu0 0
      %1090 = vmatmul.mubr.bf16.gmra.mrb[0].mxu0 %v616
      %v1091 = vpop.f32.mrb[0].mxu0
      %v1092 = vadd.f32 %v979, %v1091
      %v1093 = vpop.f32.mrb[0].mxu0
      %v1094 = vadd.f32 %v981, %v1093
      %v1095 = vpop.f32.mrb[0].mxu0
      %v1096 = vadd.f32 %v983, %v1095
      %v1097 = vpop.f32.mrb[0].mxu0
      %v1098 = vadd.f32 %v985, %v1097
      %1099 = vmatprep.mubr.bf16.mxu0 0
      %1100 = vmatmul.mubr.bf16.gmra.mrb[0].mxu0 %v619
      %v1101 = vpop.f32.mrb[0].mxu0
      %v1102 = vadd.f32 %v989, %v1101
      %v1103 = vpop.f32.mrb[0].mxu0
      %v1104 = vadd.f32 %v991, %v1103
      %v1105 = vpop.f32.mrb[0].mxu0
      %v1106 = vadd.f32 %v993, %v1105
      %v1107 = vpop.f32.mrb[0].mxu0
      %v1108 = vadd.f32 %v995, %v1107
      %1109 = vdwg.mxu0
      %v1110 = vld [vmem:[%s328] sm:$0xff]
      %v1111 = vld [vmem:[%s328 + $0x8] sm:$0xff]
      %v1112 = vld [vmem:[%s328 + $0x10] sm:$0xff]
      %v1113 = vld [vmem:[%s328 + $0x18] sm:$0xff]
      %v1114 = vld [vmem:[%s328 + $0x20] sm:$0xff]
      %v1115 = vld [vmem:[%s328 + $0x28] sm:$0xff]
      %v1116 = vld [vmem:[%s328 + $0x30] sm:$0xff]
      %v1117 = vld [vmem:[%s328 + $0x38] sm:$0xff]
      %v1118 = vld [vmem:[%s4] sm:$0xff]
      %v1119 = vld [vmem:[%s4 + $0x8] sm:$0xff]
      %v1120 = vld [vmem:[%s4 + $0x10] sm:$0xff]
      %v1121 = vld [vmem:[%s4 + $0x18] sm:$0xff]
      %v1122 = vld [vmem:[%s4 + $0x20] sm:$0xff]
      %v1123 = vld [vmem:[%s4 + $0x28] sm:$0xff]
      %v1124 = vld [vmem:[%s4 + $0x30] sm:$0xff]
      %v1125 = vld [vmem:[%s4 + $0x38] sm:$0xff]
      %v1126 = vld [vmem:[%s5] sm:$0xff]
      %v1127 = vld [vmem:[%s5 + $0x8] sm:$0xff]
      %v1128 = vld [vmem:[%s5 + $0x10] sm:$0xff]
      %v1129 = vld [vmem:[%s5 + $0x18] sm:$0xff]
      %v1130 = vld [vmem:[%s5 + $0x20] sm:$0xff]
      %v1131 = vld [vmem:[%s5 + $0x28] sm:$0xff]
      %v1132 = vld [vmem:[%s5 + $0x30] sm:$0xff]
      %v1133 = vld [vmem:[%s5 + $0x38] sm:$0xff]
      %v1134 = vld [vmem:[%s6] sm:$0xff]
      %v1135 = vld [vmem:[%s6 + $0x8] sm:$0xff]
      %v1136 = vld [vmem:[%s6 + $0x10] sm:$0xff]
      %v1137 = vld [vmem:[%s6 + $0x18] sm:$0xff]
      %v1138 = vld [vmem:[%s6 + $0x20] sm:$0xff]
      %v1139 = vld [vmem:[%s6 + $0x28] sm:$0xff]
      %v1140 = vld [vmem:[%s6 + $0x30] sm:$0xff]
      %v1141 = vld [vmem:[%s6 + $0x38] sm:$0xff]
      %v1142 = vmul.f32 %v1118, %v1110
      %v1143 = vmul.f32 %v1119, %v1111
      %v1144 = vmul.f32 %v1120, %v1112
      %v1145 = vmul.f32 %v1121, %v1113
      %v1146 = vmul.f32 %v1122, %v1114
      %v1147 = vmul.f32 %v1123, %v1115
      %v1148 = vmul.f32 %v1124, %v1116
      %v1149 = vmul.f32 %v1125, %v1117
      %v1150 = vadd.f32 %v1032, %v1142
      %v1151 = vadd.f32 %v1034, %v1143
      %v1152 = vadd.f32 %v1036, %v1144
      %v1153 = vadd.f32 %v1038, %v1145
      %v1154 = vadd.f32 %v1042, %v1146
      %v1155 = vadd.f32 %v1044, %v1147
      %v1156 = vadd.f32 %v1046, %v1148
      %v1157 = vadd.f32 %v1048, %v1149
      %v1158 = vxor.u32 %v1150, 2147483648
      %v1159 = vxor.u32 %v1151, 2147483648
      %v1160 = vxor.u32 %v1152, 2147483648
      %v1161 = vxor.u32 %v1153, 2147483648
      %v1162 = vxor.u32 %v1154, 2147483648
      %v1163 = vxor.u32 %v1155, 2147483648
      %v1164 = vxor.u32 %v1156, 2147483648
      %v1165 = vxor.u32 %v1157, 2147483648
      %v1166 = vmul.f32 %v1158, 1.442695
      %v1167 = vpow.pop %v1166
      %v1168 = vmul.f32 %v1159, 1.442695
      %v1169 = vpow.pop %v1168
      %v1170 = vmul.f32 %v1160, 1.442695
      %v1171 = vpow.pop %v1170
      %v1172 = vmul.f32 %v1161, 1.442695
      %v1173 = vpow.pop %v1172
      %v1174 = vmul.f32 %v1162, 1.442695
      %v1175 = vpow.pop %v1174
      %v1176 = vmul.f32 %v1163, 1.442695
      %v1177 = vpow.pop %v1176
      %v1178 = vmul.f32 %v1164, 1.442695
      %v1179 = vpow.pop %v1178
      %v1180 = vmul.f32 %v1165, 1.442695
      %v1181 = vpow.pop %v1180
      %v1182 = vadd.f32 %v1167, 1.0
      %v1183 = vadd.f32 %v1169, 1.0
      %v1184 = vadd.f32 %v1171, 1.0
      %v1185 = vadd.f32 %v1173, 1.0
      %v1186 = vadd.f32 %v1175, 1.0
      %v1187 = vadd.f32 %v1177, 1.0
      %v1188 = vadd.f32 %v1179, 1.0
      %v1189 = vadd.f32 %v1181, 1.0
      %v1190 = vrcp.pop %v1182
      %v1191 = vmul.f32 1.0, %v1190
      %v1192 = vrcp.pop %v1183
      %v1193 = vmul.f32 1.0, %v1192
      %v1194 = vrcp.pop %v1184
      %v1195 = vmul.f32 1.0, %v1194
      %v1196 = vrcp.pop %v1185
      %v1197 = vmul.f32 1.0, %v1196
      %v1198 = vrcp.pop %v1186
      %v1199 = vmul.f32 1.0, %v1198
      %v1200 = vrcp.pop %v1187
      %v1201 = vmul.f32 1.0, %v1200
      %v1202 = vrcp.pop %v1188
      %v1203 = vmul.f32 1.0, %v1202
      %v1204 = vrcp.pop %v1189
      %v1205 = vmul.f32 1.0, %v1204
      %v1206 = vmul.f32 %v1126, %v1110
      %v1207 = vmul.f32 %v1127, %v1111
      %v1208 = vmul.f32 %v1128, %v1112
      %v1209 = vmul.f32 %v1129, %v1113
      %v1210 = vmul.f32 %v1130, %v1114
      %v1211 = vmul.f32 %v1131, %v1115
      %v1212 = vmul.f32 %v1132, %v1116
      %v1213 = vmul.f32 %v1133, %v1117
      %v1214 = vadd.f32 %v1052, %v1206
      %v1215 = vadd.f32 %v1054, %v1207
      %v1216 = vadd.f32 %v1056, %v1208
      %v1217 = vadd.f32 %v1058, %v1209
      %v1218 = vadd.f32 %v1062, %v1210
      %v1219 = vadd.f32 %v1064, %v1211
      %v1220 = vadd.f32 %v1066, %v1212
      %v1221 = vadd.f32 %v1068, %v1213
      %v1222 = vxor.u32 %v1214, 2147483648
      %v1223 = vxor.u32 %v1215, 2147483648
      %v1224 = vxor.u32 %v1216, 2147483648
      %v1225 = vxor.u32 %v1217, 2147483648
      %v1226 = vxor.u32 %v1218, 2147483648
      %v1227 = vxor.u32 %v1219, 2147483648
      %v1228 = vxor.u32 %v1220, 2147483648
      %v1229 = vxor.u32 %v1221, 2147483648
      %v1230 = vmul.f32 %v1222, 1.442695
      %v1231 = vpow.pop %v1230
      %v1232 = vmul.f32 %v1223, 1.442695
      %v1233 = vpow.pop %v1232
      %v1234 = vmul.f32 %v1224, 1.442695
      %v1235 = vpow.pop %v1234
      %v1236 = vmul.f32 %v1225, 1.442695
      %v1237 = vpow.pop %v1236
      %v1238 = vmul.f32 %v1226, 1.442695
      %v1239 = vpow.pop %v1238
      %v1240 = vmul.f32 %v1227, 1.442695
      %v1241 = vpow.pop %v1240
      %v1242 = vmul.f32 %v1228, 1.442695
      %v1243 = vpow.pop %v1242
      %v1244 = vmul.f32 %v1229, 1.442695
      %v1245 = vpow.pop %v1244
      %v1246 = vadd.f32 %v1231, 1.0
      %v1247 = vadd.f32 %v1233, 1.0
      %v1248 = vadd.f32 %v1235, 1.0
      %v1249 = vadd.f32 %v1237, 1.0
      %v1250 = vadd.f32 %v1239, 1.0
      %v1251 = vadd.f32 %v1241, 1.0
      %v1252 = vadd.f32 %v1243, 1.0
      %v1253 = vadd.f32 %v1245, 1.0
      %v1254 = vrcp.pop %v1246
      %v1255 = vmul.f32 1.0, %v1254
      %v1256 = vrcp.pop %v1247
      %v1257 = vmul.f32 1.0, %v1256
      %v1258 = vrcp.pop %v1248
      %v1259 = vmul.f32 1.0, %v1258
      %v1260 = vrcp.pop %v1249
      %v1261 = vmul.f32 1.0, %v1260
      %v1262 = vrcp.pop %v1250
      %v1263 = vmul.f32 1.0, %v1262
      %v1264 = vrcp.pop %v1251
      %v1265 = vmul.f32 1.0, %v1264
      %v1266 = vrcp.pop %v1252
      %v1267 = vmul.f32 1.0, %v1266
      %v1268 = vrcp.pop %v1253
      %v1269 = vmul.f32 1.0, %v1268
      %v1270 = vmul.f32 %v1255, %v1110
      %v1271 = vmul.f32 %v1257, %v1111
      %v1272 = vmul.f32 %v1259, %v1112
      %v1273 = vmul.f32 %v1261, %v1113
      %v1274 = vmul.f32 %v1263, %v1114
      %v1275 = vmul.f32 %v1265, %v1115
      %v1276 = vmul.f32 %v1267, %v1116
      %v1277 = vmul.f32 %v1269, %v1117
      %v1278 = vtanh.pop %v1072
      %v1279 = vtanh.pop %v1074
      %v1280 = vtanh.pop %v1076
      %v1281 = vtanh.pop %v1078
      %v1282 = vtanh.pop %v1082
      %v1283 = vtanh.pop %v1084
      %v1284 = vtanh.pop %v1086
      %v1285 = vtanh.pop %v1088
      %v1286 = vmul.f32 %v1191, %v1278
      %v1287 = vmul.f32 %v1193, %v1279
      %v1288 = vmul.f32 %v1195, %v1280
      %v1289 = vmul.f32 %v1197, %v1281
      %v1290 = vmul.f32 %v1199, %v1282
      %v1291 = vmul.f32 %v1201, %v1283
      %v1292 = vmul.f32 %v1203, %v1284
      %v1293 = vmul.f32 %v1205, %v1285
      %v1294 = vadd.f32 %v1270, %v1286
      %v1295 = vadd.f32 %v1271, %v1287
      %v1296 = vadd.f32 %v1272, %v1288
      %v1297 = vadd.f32 %v1273, %v1289
      %v1298 = vadd.f32 %v1274, %v1290
      %v1299 = vadd.f32 %v1275, %v1291
      %v1300 = vadd.f32 %v1276, %v1292
      %v1301 = vadd.f32 %v1277, %v1293
      %v1302 = vmul.f32 %v1134, %v1294
      %v1303 = vmul.f32 %v1135, %v1295
      %v1304 = vmul.f32 %v1136, %v1296
      %v1305 = vmul.f32 %v1137, %v1297
      %v1306 = vmul.f32 %v1138, %v1298
      %v1307 = vmul.f32 %v1139, %v1299
      %v1308 = vmul.f32 %v1140, %v1300
      %v1309 = vmul.f32 %v1141, %v1301
      %v1310 = vadd.f32 %v1092, %v1302
      %v1311 = vadd.f32 %v1094, %v1303
      %v1312 = vadd.f32 %v1096, %v1304
      %v1313 = vadd.f32 %v1098, %v1305
      %v1314 = vadd.f32 %v1102, %v1306
      %v1315 = vadd.f32 %v1104, %v1307
      %v1316 = vadd.f32 %v1106, %v1308
      %v1317 = vadd.f32 %v1108, %v1309
      %v1318 = vxor.u32 %v1310, 2147483648
      %v1319 = vxor.u32 %v1311, 2147483648
      %v1320 = vxor.u32 %v1312, 2147483648
      %v1321 = vxor.u32 %v1313, 2147483648
      %v1322 = vxor.u32 %v1314, 2147483648
      %v1323 = vxor.u32 %v1315, 2147483648
      %v1324 = vxor.u32 %v1316, 2147483648
      %v1325 = vxor.u32 %v1317, 2147483648
      %v1326 = vmul.f32 %v1318, 1.442695
      %v1327 = vpow.pop %v1326
      %v1328 = vmul.f32 %v1319, 1.442695
      %v1329 = vpow.pop %v1328
      %v1330 = vmul.f32 %v1320, 1.442695
      %v1331 = vpow.pop %v1330
      %v1332 = vmul.f32 %v1321, 1.442695
      %v1333 = vpow.pop %v1332
      %v1334 = vmul.f32 %v1322, 1.442695
      %v1335 = vpow.pop %v1334
      %v1336 = vmul.f32 %v1323, 1.442695
      %v1337 = vpow.pop %v1336
      %v1338 = vmul.f32 %v1324, 1.442695
      %v1339 = vpow.pop %v1338
      %v1340 = vmul.f32 %v1325, 1.442695
      %v1341 = vpow.pop %v1340
      %v1342 = vadd.f32 %v1327, 1.0
      %v1343 = vadd.f32 %v1329, 1.0
      %v1344 = vadd.f32 %v1331, 1.0
      %v1345 = vadd.f32 %v1333, 1.0
      %v1346 = vadd.f32 %v1335, 1.0
      %v1347 = vadd.f32 %v1337, 1.0
      %v1348 = vadd.f32 %v1339, 1.0
      %v1349 = vadd.f32 %v1341, 1.0
      %v1350 = vrcp.pop %v1342
      %v1351 = vmul.f32 1.0, %v1350
      %v1352 = vrcp.pop %v1343
      %v1353 = vmul.f32 1.0, %v1352
      %v1354 = vrcp.pop %v1344
      %v1355 = vmul.f32 1.0, %v1354
      %v1356 = vrcp.pop %v1345
      %v1357 = vmul.f32 1.0, %v1356
      %v1358 = vrcp.pop %v1346
      %v1359 = vmul.f32 1.0, %v1358
      %v1360 = vrcp.pop %v1347
      %v1361 = vmul.f32 1.0, %v1360
      %v1362 = vrcp.pop %v1348
      %v1363 = vmul.f32 1.0, %v1362
      %v1364 = vrcp.pop %v1349
      %v1365 = vmul.f32 1.0, %v1364
      %v1366 = vtanh.pop %v1294
      %v1367 = vtanh.pop %v1295
      %v1368 = vtanh.pop %v1296
      %v1369 = vtanh.pop %v1297
      %v1370 = vtanh.pop %v1298
      %v1371 = vtanh.pop %v1299
      %v1372 = vtanh.pop %v1300
      %v1373 = vtanh.pop %v1301
      %v1374 = vmul.f32 %v1351, %v1366
      %v1375 = vmul.f32 %v1353, %v1367
      %v1376 = vmul.f32 %v1355, %v1368
      %v1377 = vmul.f32 %v1357, %v1369
      %v1378 = vmul.f32 %v1359, %v1370
      %v1379 = vmul.f32 %v1361, %v1371
      %v1380 = vmul.f32 %v1363, %v1372
      %v1381 = vmul.f32 %v1365, %v1373
      %1382 = vst [vmem:[%s333] sm:$0xff] %v1374
      %1383 = vst [vmem:[%s333 + $0x8] sm:$0xff] %v1375
      %1384 = vst [vmem:[%s333 + $0x10] sm:$0xff] %v1376
      %1385 = vst [vmem:[%s333 + $0x18] sm:$0xff] %v1377
      %1386 = vst [vmem:[%s333 + $0x20] sm:$0xff] %v1378
      %1387 = vst [vmem:[%s333 + $0x28] sm:$0xff] %v1379
      %1388 = vst [vmem:[%s333 + $0x30] sm:$0xff] %v1380
      %1389 = vst [vmem:[%s333 + $0x38] sm:$0xff] %v1381
      %1390 = vst [vmem:[%s338] sm:$0xff] %v1294
      %1391 = vst [vmem:[%s338 + $0x8] sm:$0xff] %v1295
      %1392 = vst [vmem:[%s338 + $0x10] sm:$0xff] %v1296
      %1393 = vst [vmem:[%s338 + $0x18] sm:$0xff] %v1297
      %1394 = vst [vmem:[%s338 + $0x20] sm:$0xff] %v1298
      %1395 = vst [vmem:[%s338 + $0x28] sm:$0xff] %v1299
      %1396 = vst [vmem:[%s338 + $0x30] sm:$0xff] %v1300
      %1397 = vst [vmem:[%s338 + $0x38] sm:$0xff] %v1301
      %p1398 = scmp.lt.s32.totalorder %s20, 1
      %s1399 = scalar_select %p1398, %s20, 1
      %s1400 = smul.addr %s1399, 8
      %s1401 = smul.addr %s1400, 8
      %s1402 = scalar_lea.vmem %s7, %s1401
      %p1403 = scmp.lt.s32.totalorder %s20, 1
      %s1404 = scalar_select %p1403, %s20, 1
      %s1405 = smul.addr %s1404, 8
      %s1406 = smul.addr %s1405, 8
      %s1407 = scalar_lea.vmem %s8, %s1406
      // Predicated region
      $region49: #{convlstm_cell_forward.1} parent=47 // pred_check
        %p1408 = pneg %p195
      $region50: #{convlstm_cell_forward.1} parent=47 // pred_check_branch
        %1410 = sbr.rel (%p1408) target = $region52
      $region51: #{convlstm_cell_forward.1} parent=47 // pred_region
        _
      $region52: #{convlstm_cell_forward.1} parent=47 // pred_fallthru
        _
      // Predicated region
      $region53: #{convlstm_cell_forward.1} parent=47 // pred_check
        %p1411 = pneg %p221
      $region54: #{convlstm_cell_forward.1} parent=47 // pred_check_branch
        %1413 = sbr.rel (%p1411) target = $region56
      $region55: #{convlstm_cell_forward.1} parent=47 // pred_region
        _
      $region56: #{convlstm_cell_forward.1} parent=47 // pred_fallthru
        _
    $region48: #{convlstm_cell_forward.1} parent=5 // pred_fallthru
      _
    %p1414 = scmp.le.s32.totalorder 2, %s15
    // Predicated region
    $region57: #{convlstm_cell_forward.1} parent=5 // pred_check
      %p1415 = pneg %p1414
    $region58: #{convlstm_cell_forward.1} parent=5 // pred_check_branch
      %1417 = sbr.rel (%p1415) target = $region60
    $region59: #{convlstm_cell_forward.1} parent=5 // pred_region
      %s1418 = ssub.s32 %s15, 2
      // Predicated region
      $region61: #{convlstm_cell_forward.1} parent=59 // pred_check
        %p1419 = pneg %p201
      $region62: #{convlstm_cell_forward.1} parent=59 // pred_check_branch
        %1421 = sbr.rel (%p1419) target = $region64
      $region63: #{convlstm_cell_forward.1} parent=59 // pred_region
        %p1422 = scmp.lt.s32.totalorder %s21, 1
        %s1423 = scalar_select %p1422, %s21, 1
        %s1424 = smul.addr %s1423, 8
        %s1425 = smul.addr %s1424, 8
        %s1426 = scalar_lea.vmem %s7, %s1425
      $region64: #{convlstm_cell_forward.1} parent=59 // pred_fallthru
        _
      // Predicated region
      $region65: #{convlstm_cell_forward.1} parent=59 // pred_check
        %p1427 = pneg %p227
      $region66: #{convlstm_cell_forward.1} parent=59 // pred_check_branch
        %1429 = sbr.rel (%p1427) target = $region68
      $region67: #{convlstm_cell_forward.1} parent=59 // pred_region
        %p1430 = scmp.lt.s32.totalorder %s21, 1
        %s1431 = scalar_select %p1430, %s21, 1
        %s1432 = smul.addr %s1431, 8
        %s1433 = smul.addr %s1432, 8
        %s1434 = scalar_lea.vmem %s8, %s1433
      $region68: #{convlstm_cell_forward.1} parent=59 // pred_fallthru
        _
    $region60: #{convlstm_cell_forward.1} parent=5 // pred_fallthru
      _
  $region6: #{convlstm_cell_forward.1} parent=0 // loop_footer
    %s19 = sadd.s32 1, %s15
  $region7: #{convlstm_cell_forward.1} parent=0 // loop_footer_branch
    %14 = sbr.rel target = $region3
  $region8: #{convlstm_cell_forward.1} parent=0 // loop_exit
    _

</llo_original>
